<compile_context>
chip_gen: v6e
topology: v6e:2x2x1
jax: 0.10.0
libtpu: 0.0.40
codegen_flags: <defaults>
</compile_context>

<pallas_src>
import functools

import jax
import jax.numpy as jnp
from jax.experimental import pallas as pl
from jax.experimental.pallas import tpu as pltpu


_LANE = 128
_BF16_SUBLANE = 16  # bf16 packs 16 rows per vreg


def _round_up(x, m):
    return ((x + m - 1) // m) * m


def _cdiv(a, b):
    return -(-a // b)


def _has_bf16_vpu():
    """bf16 VALU epilogue only on v6e/v7x; v5e & older stay f32."""
    try:
        kind = jax.devices()[0].device_kind.lower()
    except Exception:
        return False
    return ("v6" in kind) or ("v7" in kind)


def _ae_kernel(x_ref,
               w1_ref, b1_ref,
               w2_ref, b2_ref,
               w34_ref, b34_ref,
               w5_ref, b5_ref,
               w6_ref, b6_ref,
               o_ref, *, bf16_epilogue):
    """Fused autoencoder forward for one batch tile (bf16 MXU, f32 accum)."""
    # Cast to bf16 inside the kernel (no wrapper-side pad/cast HBM pass).
    h = x_ref[...].astype(jnp.bfloat16)

    def layer(h, w_ref, b_ref, relu):
        a = jnp.dot(h, w_ref[...], preferred_element_type=jnp.float32)
        if bf16_epilogue:
            # v6e/v7x: packed-bf16 bias-add + ReLU halves VALU slot pressure.
            a = a.astype(jnp.bfloat16) + b_ref[...]
            if relu:
                a = jnp.maximum(a, 0)
            return a
        else:
            # v5e: keep the epilogue in f32 (no bf16 VALU).
            a = a + b_ref[...]
            if relu:
                a = jnp.maximum(a, 0.0)
            return a.astype(jnp.bfloat16)

    # encoder: Linear -> ReLU -> Linear -> ReLU
    h = layer(h, w1_ref, b1_ref, relu=True)
    h = layer(h, w2_ref, b2_ref, relu=True)
    # fused bottleneck: enc L3 (128->hidden) + dec L4 (hidden->128), then ReLU
    h = layer(h, w34_ref, b34_ref, relu=True)
    # decoder tail: Linear -> ReLU -> Linear
    h = layer(h, w5_ref, b5_ref, relu=True)
    h = layer(h, w6_ref, b6_ref, relu=False)

    o_ref[...] = h  # bf16, lane-dense 128-wide store


def _pack_params(params, d_out_p, *, bias_dtype):
    """Fuse bottleneck pair, lane-pad output layer, cast weights to bf16."""
    (w1, b1), (w2, b2), (w3, b3), (w4, b4), (w5, b5), (w6, b6) = params

    # Activation-free 128 -> hidden -> 128 pair folded into one 128x128 layer.
    w34 = jnp.dot(w3, w4, preferred_element_type=jnp.float32)
    b34 = jnp.dot(b3, w4, preferred_element_type=jnp.float32) + b4

    d_out = w6.shape[1]
    w6p = jnp.pad(w6, ((0, 0), (0, d_out_p - d_out)))   # zero output cols, sliced off later
    b6p = jnp.pad(b6, ((0, 0), (0, d_out_p - d_out)))

    weights = [w1, w2, w34, w5, w6p]
    biases = [b1, b2, b34, b5, b6p]

    flat = []
    for w, b in zip(weights, biases):
        flat.append(w.astype(jnp.bfloat16))   # bf16 MXU inputs, halves weight DMA bytes
        flat.append(b.astype(bias_dtype))     # bf16 on v6e/v7x, f32 on v5e
    return flat


def _pick_tile(B, batch_tile):
    """16-aligned tile; even grid-step count (>=2) when batch exceeds the tile."""
    batch_tile = max(_BF16_SUBLANE, _round_up(batch_tile, _BF16_SUBLANE))
    b_aligned = _round_up(B, _BF16_SUBLANE)
    if b_aligned <= batch_tile:
        return b_aligned, 1
    n_steps = 2 * _cdiv(b_aligned, 2 * batch_tile)          # even, >= 2 (v7x 2-TC sharding)
    tile = _round_up(_cdiv(b_aligned, n_steps), _BF16_SUBLANE)
    return tile, n_steps


def autoencoder_forward(x, params, *, batch_tile=1024):
    """Fused autoencoder forward.

    x: (B, input_size) float32
    params: list of 6 (W, b) with W of shape (in, out), b of shape (1, out), f32.
    """
    B, d_in = x.shape
    d_out = params[-1][0].shape[1]
    d_out_p = _round_up(d_out, _LANE)

    bf16_epilogue = _has_bf16_vpu()
    bias_dtype = jnp.bfloat16 if bf16_epilogue else jnp.float32
    flat_params = _pack_params(params, d_out_p, bias_dtype=bias_dtype)

    tile, n_steps = _pick_tile(B, batch_tile)
    b_p = tile * n_steps
    grid = (n_steps,)

    # Only pad the batch when the grid doesn't divide it; no dtype cast, no
    # feature-dim padding (d_in == full array dim, so the BlockSpec is legal).
    x_in = x if b_p == B else jnp.pad(x, ((0, b_p - B), (0, 0)))

    # Weights/biases: full-array blocks with a constant index map -> resident
    # in VMEM, not re-fetched between grid steps (~0.6 MiB total in bf16).
    weight_specs = [pl.BlockSpec(p.shape, lambda i: (0, 0)) for p in flat_params]

    flops = 2 * b_p * (d_in * 512 + 512 * 128 + 128 * 128 + 128 * 512 + 512 * d_out_p)
    bytes_weights = sum(int(p.size) * p.dtype.itemsize for p in flat_params)
    bytes_accessed = int(x_in.size) * x_in.dtype.itemsize + b_p * d_out_p * 2 + bytes_weights

    kernel = functools.partial(_ae_kernel, bf16_epilogue=bf16_epilogue)

    out = pl.pallas_call(
        kernel,
        out_shape=jax.ShapeDtypeStruct((b_p, d_out_p), jnp.bfloat16),
        grid_spec=pltpu.PrefetchScalarGridSpec(
            num_scalar_prefetch=0,
            grid=grid,
            in_specs=[pl.BlockSpec((tile, d_in), lambda i: (i, 0))] + weight_specs,
            out_specs=pl.BlockSpec((tile, d_out_p), lambda i: (i, 0)),
        ),
        compiler_params=pltpu.CompilerParams(
            dimension_semantics=("parallel",),
        ),
        cost_estimate=pl.CostEstimate(
            flops=flops, transcendentals=0, bytes_accessed=bytes_accessed),
    )(x_in, *flat_params)

    # Slice off batch/lane padding and restore f32 on the small (B, d_out) result.
    return out[:B, :d_out].astype(jnp.float32)


def init_params(key, input_size, hidden):
    """Deterministic synthetic parameters (shapes match the nn.Linear layers)."""
    layer_dims = [
        (input_size, 512),
        (512, 128),
        (128, hidden),
        (hidden, 128),
        (128, 512),
        (512, input_size),
    ]
    params = []
    for (d_in, d_out) in layer_dims:
        key, kw, kb = jax.random.split(key, 3)
        scale = 1.0 / jnp.sqrt(jnp.float32(d_in))
        w = jax.random.uniform(kw, (d_in, d_out), jnp.float32, -scale, scale)
        b = jax.random.uniform(kb, (1, d_out), jnp.float32, -scale, scale)
        params.append((w, b))
    return params


def reference_forward(x, params):
    """Plain-JAX f32 reference matching the PyTorch module exactly."""
    h = x
    for idx, (w, b) in enumerate(params):
        h = h @ w + b
        if idx in (0, 1, 3, 4):   # ReLU after L1, L2, L4, L5 only
            h = jnp.maximum(h, 0.0)
    return h


if __name__ == "__main__":
    key = jax.random.PRNGKey(0)
    key, kx = jax.random.split(key)

    batch = 8
    input_size = 64
    hidden = 16

    x = jax.random.normal(kx, (batch, input_size), jnp.float32)
    params = init_params(key, input_size, hidden)

    run = jax.jit(autoencoder_forward, static_argnames=("batch_tile",))

    # Tolerances reflect bf16 MXU inputs + (on v6e/v7x) a bf16 bias/ReLU epilogue.
    tol = dict(atol=3e-2, rtol=3e-2)

    # Small correctness case (single grid step).
    out = jax.block_until_ready(run(x, params))
    ref = reference_forward(x, params)
    assert out.shape == (batch, input_size)
    assert jnp.allclose(out, ref, **tol), "mismatch vs reference (small batch)"

    # Non-divisible batch with a small forced tile: exercises batch padding and
    # the multi-step even-count 'parallel' grid (pipelined DMA, 2-TC on v7x).
    key, kx2 = jax.random.split(key)
    x2 = jax.random.normal(kx2, (300, input_size), jnp.float32)
    out2 = jax.block_until_ready(run(x2, params, batch_tile=64))
    ref2 = reference_forward(x2, params)
    assert out2.shape == (300, input_size)
    assert jnp.allclose(out2, ref2, **tol), "mismatch vs reference (batch 300, multi-tile)"

    print("KERNEL_OK")
</pallas_src>

<mosaic_0001>
module attributes {stable_mosaic.version = 11 : i64} {
  func.func @_ae_kernel(%arg0: i32, %arg1: memref<16x64xf32, #tpu.memory_space<vmem>>, %arg2: memref<64x512xbf16, #tpu.memory_space<vmem>>, %arg3: memref<1x512xf32, #tpu.memory_space<vmem>>, %arg4: memref<512x128xbf16, #tpu.memory_space<vmem>>, %arg5: memref<1x128xf32, #tpu.memory_space<vmem>>, %arg6: memref<128x128xbf16, #tpu.memory_space<vmem>>, %arg7: memref<1x128xf32, #tpu.memory_space<vmem>>, %arg8: memref<128x512xbf16, #tpu.memory_space<vmem>>, %arg9: memref<1x512xf32, #tpu.memory_space<vmem>>, %arg10: memref<512x128xbf16, #tpu.memory_space<vmem>>, %arg11: memref<1x128xf32, #tpu.memory_space<vmem>>, %arg12: memref<16x128xbf16, #tpu.memory_space<vmem>>) attributes {dimension_semantics = [#tpu.dimension_semantics<parallel>], iteration_bounds = array<i64: 1>, scalar_prefetch = 0 : i64, scratch_operands = 0 : i64, tpu.core_type = #tpu.core_type<tc>, window_params = [{transform_indices = @transform_0, window_bounds = array<i64: 16, 64>}, {pipeline_mode = #tpu.pipeline_mode<synchronous>, transform_indices = @transform_1, window_bounds = array<i64: 64, 512>}, {pipeline_mode = #tpu.pipeline_mode<synchronous>, transform_indices = @transform_2, window_bounds = array<i64: 1, 512>}, {pipeline_mode = #tpu.pipeline_mode<synchronous>, transform_indices = @transform_3, window_bounds = array<i64: 512, 128>}, {pipeline_mode = #tpu.pipeline_mode<synchronous>, transform_indices = @transform_4, window_bounds = array<i64: 1, 128>}, {pipeline_mode = #tpu.pipeline_mode<synchronous>, transform_indices = @transform_5, window_bounds = array<i64: 128, 128>}, {pipeline_mode = #tpu.pipeline_mode<synchronous>, transform_indices = @transform_6, window_bounds = array<i64: 1, 128>}, {pipeline_mode = #tpu.pipeline_mode<synchronous>, transform_indices = @transform_7, window_bounds = array<i64: 128, 512>}, {pipeline_mode = #tpu.pipeline_mode<synchronous>, transform_indices = @transform_8, window_bounds = array<i64: 1, 512>}, {pipeline_mode = #tpu.pipeline_mode<synchronous>, transform_indices = @transform_9, window_bounds = array<i64: 512, 128>}, {pipeline_mode = #tpu.pipeline_mode<synchronous>, transform_indices = @transform_10, window_bounds = array<i64: 1, 128>}, {transform_indices = @transform_11, window_bounds = array<i64: 16, 128>}]} {
    %c0 = arith.constant 0 : index
    %c0_0 = arith.constant 0 : index
    %0 = vector.load %arg1[%c0, %c0_0] : memref<16x64xf32, #tpu.memory_space<vmem>>, vector<16x64xf32>
    %1 = arith.truncf %0 : vector<16x64xf32> to vector<16x64xbf16>
    %c0_1 = arith.constant 0 : index
    %c0_2 = arith.constant 0 : index
    %2 = vector.load %arg2[%c0_1, %c0_2] : memref<64x512xbf16, #tpu.memory_space<vmem>>, vector<64x512xbf16>
    %cst = arith.constant dense<0.000000e+00> : vector<16x512xf32>
    %3 = tpu.matmul %1, %2, %cst {dimension_numbers = #tpu.dot_dimension_numbers<[1], [0], [0], [1], [0, 0, 1, 1], [], []>} : vector<16x64xbf16>, vector<64x512xbf16>, vector<16x512xf32> -> vector<16x512xf32>
    %c0_3 = arith.constant 0 : index
    %c0_4 = arith.constant 0 : index
    %4 = vector.load %arg3[%c0_3, %c0_4] : memref<1x512xf32, #tpu.memory_space<vmem>>, vector<1x512xf32>
    %5 = vector.broadcast %4 : vector<1x512xf32> to vector<16x512xf32>
    %6 = arith.addf %3, %5 : vector<16x512xf32>
    %cst_5 = arith.constant 0.000000e+00 : f32
    %7 = vector.broadcast %cst_5 : f32 to vector<16x512xf32>
    %8 = arith.maximumf %6, %7 : vector<16x512xf32>
    %9 = arith.truncf %8 : vector<16x512xf32> to vector<16x512xbf16>
    %c0_6 = arith.constant 0 : index
    %c0_7 = arith.constant 0 : index
    %10 = vector.load %arg4[%c0_6, %c0_7] : memref<512x128xbf16, #tpu.memory_space<vmem>>, vector<512x128xbf16>
    %cst_8 = arith.constant dense<0.000000e+00> : vector<16x128xf32>
    %11 = tpu.matmul %9, %10, %cst_8 {dimension_numbers = #tpu.dot_dimension_numbers<[1], [0], [0], [1], [0, 0, 1, 1], [], []>} : vector<16x512xbf16>, vector<512x128xbf16>, vector<16x128xf32> -> vector<16x128xf32>
    %c0_9 = arith.constant 0 : index
    %c0_10 = arith.constant 0 : index
    %12 = vector.load %arg5[%c0_9, %c0_10] : memref<1x128xf32, #tpu.memory_space<vmem>>, vector<1x128xf32>
    %13 = vector.broadcast %12 : vector<1x128xf32> to vector<16x128xf32>
    %14 = arith.addf %11, %13 : vector<16x128xf32>
    %cst_11 = arith.constant 0.000000e+00 : f32
    %15 = vector.broadcast %cst_11 : f32 to vector<16x128xf32>
    %16 = arith.maximumf %14, %15 : vector<16x128xf32>
    %17 = arith.truncf %16 : vector<16x128xf32> to vector<16x128xbf16>
    %c0_12 = arith.constant 0 : index
    %c0_13 = arith.constant 0 : index
    %18 = vector.load %arg6[%c0_12, %c0_13] : memref<128x128xbf16, #tpu.memory_space<vmem>>, vector<128x128xbf16>
    %cst_14 = arith.constant dense<0.000000e+00> : vector<16x128xf32>
    %19 = tpu.matmul %17, %18, %cst_14 {dimension_numbers = #tpu.dot_dimension_numbers<[1], [0], [0], [1], [0, 0, 1, 1], [], []>} : vector<16x128xbf16>, vector<128x128xbf16>, vector<16x128xf32> -> vector<16x128xf32>
    %c0_15 = arith.constant 0 : index
    %c0_16 = arith.constant 0 : index
    %20 = vector.load %arg7[%c0_15, %c0_16] : memref<1x128xf32, #tpu.memory_space<vmem>>, vector<1x128xf32>
    %21 = vector.broadcast %20 : vector<1x128xf32> to vector<16x128xf32>
    %22 = arith.addf %19, %21 : vector<16x128xf32>
    %cst_17 = arith.constant 0.000000e+00 : f32
    %23 = vector.broadcast %cst_17 : f32 to vector<16x128xf32>
    %24 = arith.maximumf %22, %23 : vector<16x128xf32>
    %25 = arith.truncf %24 : vector<16x128xf32> to vector<16x128xbf16>
    %c0_18 = arith.constant 0 : index
    %c0_19 = arith.constant 0 : index
    %26 = vector.load %arg8[%c0_18, %c0_19] : memref<128x512xbf16, #tpu.memory_space<vmem>>, vector<128x512xbf16>
    %cst_20 = arith.constant dense<0.000000e+00> : vector<16x512xf32>
    %27 = tpu.matmul %25, %26, %cst_20 {dimension_numbers = #tpu.dot_dimension_numbers<[1], [0], [0], [1], [0, 0, 1, 1], [], []>} : vector<16x128xbf16>, vector<128x512xbf16>, vector<16x512xf32> -> vector<16x512xf32>
    %c0_21 = arith.constant 0 : index
    %c0_22 = arith.constant 0 : index
    %28 = vector.load %arg9[%c0_21, %c0_22] : memref<1x512xf32, #tpu.memory_space<vmem>>, vector<1x512xf32>
    %29 = vector.broadcast %28 : vector<1x512xf32> to vector<16x512xf32>
    %30 = arith.addf %27, %29 : vector<16x512xf32>
    %cst_23 = arith.constant 0.000000e+00 : f32
    %31 = vector.broadcast %cst_23 : f32 to vector<16x512xf32>
    %32 = arith.maximumf %30, %31 : vector<16x512xf32>
    %33 = arith.truncf %32 : vector<16x512xf32> to vector<16x512xbf16>
    %c0_24 = arith.constant 0 : index
    %c0_25 = arith.constant 0 : index
    %34 = vector.load %arg10[%c0_24, %c0_25] : memref<512x128xbf16, #tpu.memory_space<vmem>>, vector<512x128xbf16>
    %cst_26 = arith.constant dense<0.000000e+00> : vector<16x128xf32>
    %35 = tpu.matmul %33, %34, %cst_26 {dimension_numbers = #tpu.dot_dimension_numbers<[1], [0], [0], [1], [0, 0, 1, 1], [], []>} : vector<16x512xbf16>, vector<512x128xbf16>, vector<16x128xf32> -> vector<16x128xf32>
    %c0_27 = arith.constant 0 : index
    %c0_28 = arith.constant 0 : index
    %36 = vector.load %arg11[%c0_27, %c0_28] : memref<1x128xf32, #tpu.memory_space<vmem>>, vector<1x128xf32>
    %37 = vector.broadcast %36 : vector<1x128xf32> to vector<16x128xf32>
    %38 = arith.addf %35, %37 : vector<16x128xf32>
    %39 = arith.truncf %38 : vector<16x128xf32> to vector<16x128xbf16>
    %c0_29 = arith.constant 0 : index
    %c0_30 = arith.constant 0 : index
    %40 = vector.load %arg12[%c0_29, %c0_30] : memref<16x128xbf16, #tpu.memory_space<vmem>>, vector<16x128xbf16>
    tpu.vector_store %arg12[%c0_29, %c0_30], %39 {strides = array<i32>} : memref<16x128xbf16, #tpu.memory_space<vmem>>, vector<16x128xbf16>,
    return
  }
  func.func @transform_0(%arg0: i32) -> (i32, i32) {
    %c0_i32 = arith.constant 0 : i32
    %c0_i32_0 = arith.constant 0 : i32
    return %arg0, %c0_i32 : i32, i32
  }
  func.func @transform_1(%arg0: i32) -> (i32, i32) {
    %c0_i32 = arith.constant 0 : i32
    %c0_i32_0 = arith.constant 0 : i32
    %c0_i32_1 = arith.constant 0 : i32
    return %c0_i32, %c0_i32_0 : i32, i32
  }
  func.func @transform_2(%arg0: i32) -> (i32, i32) {
    %c0_i32 = arith.constant 0 : i32
    %c0_i32_0 = arith.constant 0 : i32
    %c0_i32_1 = arith.constant 0 : i32
    return %c0_i32, %c0_i32_0 : i32, i32
  }
  func.func @transform_3(%arg0: i32) -> (i32, i32) {
    %c0_i32 = arith.constant 0 : i32
    %c0_i32_0 = arith.constant 0 : i32
    %c0_i32_1 = arith.constant 0 : i32
    return %c0_i32, %c0_i32_0 : i32, i32
  }
  func.func @transform_4(%arg0: i32) -> (i32, i32) {
    %c0_i32 = arith.constant 0 : i32
    %c0_i32_0 = arith.constant 0 : i32
    %c0_i32_1 = arith.constant 0 : i32
    return %c0_i32, %c0_i32_0 : i32, i32
  }
  func.func @transform_5(%arg0: i32) -> (i32, i32) {
    %c0_i32 = arith.constant 0 : i32
    %c0_i32_0 = arith.constant 0 : i32
    %c0_i32_1 = arith.constant 0 : i32
    return %c0_i32, %c0_i32_0 : i32, i32
  }
  func.func @transform_6(%arg0: i32) -> (i32, i32) {
    %c0_i32 = arith.constant 0 : i32
    %c0_i32_0 = arith.constant 0 : i32
    %c0_i32_1 = arith.constant 0 : i32
    return %c0_i32, %c0_i32_0 : i32, i32
  }
  func.func @transform_7(%arg0: i32) -> (i32, i32) {
    %c0_i32 = arith.constant 0 : i32
    %c0_i32_0 = arith.constant 0 : i32
    %c0_i32_1 = arith.constant 0 : i32
    return %c0_i32, %c0_i32_0 : i32, i32
  }
  func.func @transform_8(%arg0: i32) -> (i32, i32) {
    %c0_i32 = arith.constant 0 : i32
    %c0_i32_0 = arith.constant 0 : i32
    %c0_i32_1 = arith.constant 0 : i32
    return %c0_i32, %c0_i32_0 : i32, i32
  }
  func.func @transform_9(%arg0: i32) -> (i32, i32) {
    %c0_i32 = arith.constant 0 : i32
    %c0_i32_0 = arith.constant 0 : i32
    %c0_i32_1 = arith.constant 0 : i32
    return %c0_i32, %c0_i32_0 : i32, i32
  }
  func.func @transform_10(%arg0: i32) -> (i32, i32) {
    %c0_i32 = arith.constant 0 : i32
    %c0_i32_0 = arith.constant 0 : i32
    %c0_i32_1 = arith.constant 0 : i32
    return %c0_i32, %c0_i32_0 : i32, i32
  }
  func.func @transform_11(%arg0: i32) -> (i32, i32) {
    %c0_i32 = arith.constant 0 : i32
    %c0_i32_0 = arith.constant 0 : i32
    return %arg0, %c0_i32 : i32, i32
  }
}

</mosaic_0001>

<llo_original>
// kernel: autoencoder_forward.1
$region0: #{autoencoder_forward.1}
  #allocation0 [shape = 'u32[]', space=smem, size = 0x4, offset = 0x4, fixed_abs, tag = 'smem constant byte address 0x4 - core index']
  #allocation1 [shape = 'u32[144,128]{1,0:T(1,128)}', space=vmem, size = 0x12000, scoped, tag = 'internal scratch']
  %s0 = inlined_call_operand.vmem [shape: f32[16,64], index: 0, kind: input, shape index: {}]
  %s1 = inlined_call_operand.vmem [shape: bf16[64,512], index: 1, kind: input, shape index: {}]
  %s2 = inlined_call_operand.vmem [shape: f32[1,512], index: 2, kind: input, shape index: {}]
  %s3 = inlined_call_operand.vmem [shape: bf16[512,128], index: 3, kind: input, shape index: {}]
  %s4 = inlined_call_operand.vmem [shape: f32[1,128], index: 4, kind: input, shape index: {}]
  %s5 = inlined_call_operand.vmem [shape: bf16[128,128], index: 5, kind: input, shape index: {}]
  %s6 = inlined_call_operand.vmem [shape: f32[1,128], index: 6, kind: input, shape index: {}]
  %s7 = inlined_call_operand.vmem [shape: bf16[128,512], index: 7, kind: input, shape index: {}]
  %s8 = inlined_call_operand.vmem [shape: f32[1,512], index: 8, kind: input, shape index: {}]
  %s9 = inlined_call_operand.vmem [shape: bf16[512,128], index: 9, kind: input, shape index: {}]
  %s10 = inlined_call_operand.vmem [shape: f32[1,128], index: 10, kind: input, shape index: {}]
  %s11 = inlined_call_operand.vmem [shape: bf16[16,128], index: 11, kind: output, shape index: {}]
  %s12 = sld [smem:[#allocation0]]
  $region54: #{autoencoder_forward.1} parent=0
    _
  %s14 = ssub.s32 1, %s12
  %s15 = scalar_select 0, %s14, %s12
  // Predicated region
  $region2: #{autoencoder_forward.1} parent=0 // pred_check
    _
  $region3: #{autoencoder_forward.1} parent=0 // pred_check_branch
    %17 = sbr.rel (0) target = $region5
  $region4: #{autoencoder_forward.1} parent=0 // pred_region
    _
  $region5: #{autoencoder_forward.1} parent=0 // pred_fallthru
    _
  // Predicated region
  $region6: #{autoencoder_forward.1} parent=0 // pred_check
    _
  $region7: #{autoencoder_forward.1} parent=0 // pred_check_branch
    %19 = sbr.rel (0) target = $region9
  $region8: #{autoencoder_forward.1} parent=0 // pred_region
    _
  $region9: #{autoencoder_forward.1} parent=0 // pred_fallthru
    _
  // Predicated region
  $region10: #{autoencoder_forward.1} parent=0 // pred_check
    _
  $region11: #{autoencoder_forward.1} parent=0 // pred_check_branch
    %21 = sbr.rel (0) target = $region13
  $region12: #{autoencoder_forward.1} parent=0 // pred_region
    _
  $region13: #{autoencoder_forward.1} parent=0 // pred_fallthru
    _
  // Predicated region
  $region14: #{autoencoder_forward.1} parent=0 // pred_check
    _
  $region15: #{autoencoder_forward.1} parent=0 // pred_check_branch
    %23 = sbr.rel (0) target = $region17
  $region16: #{autoencoder_forward.1} parent=0 // pred_region
    _
  $region17: #{autoencoder_forward.1} parent=0 // pred_fallthru
    _
  // Predicated region
  $region18: #{autoencoder_forward.1} parent=0 // pred_check
    _
  $region19: #{autoencoder_forward.1} parent=0 // pred_check_branch
    %25 = sbr.rel (0) target = $region21
  $region20: #{autoencoder_forward.1} parent=0 // pred_region
    _
  $region21: #{autoencoder_forward.1} parent=0 // pred_fallthru
    _
  // Predicated region
  $region22: #{autoencoder_forward.1} parent=0 // pred_check
    _
  $region23: #{autoencoder_forward.1} parent=0 // pred_check_branch
    %27 = sbr.rel (0) target = $region25
  $region24: #{autoencoder_forward.1} parent=0 // pred_region
    _
  $region25: #{autoencoder_forward.1} parent=0 // pred_fallthru
    _
  // Predicated region
  $region26: #{autoencoder_forward.1} parent=0 // pred_check
    _
  $region27: #{autoencoder_forward.1} parent=0 // pred_check_branch
    %29 = sbr.rel (0) target = $region29
  $region28: #{autoencoder_forward.1} parent=0 // pred_region
    _
  $region29: #{autoencoder_forward.1} parent=0 // pred_fallthru
    _
  // Predicated region
  $region30: #{autoencoder_forward.1} parent=0 // pred_check
    _
  $region31: #{autoencoder_forward.1} parent=0 // pred_check_branch
    %31 = sbr.rel (0) target = $region33
  $region32: #{autoencoder_forward.1} parent=0 // pred_region
    _
  $region33: #{autoencoder_forward.1} parent=0 // pred_fallthru
    _
  // Predicated region
  $region34: #{autoencoder_forward.1} parent=0 // pred_check
    _
  $region35: #{autoencoder_forward.1} parent=0 // pred_check_branch
    %33 = sbr.rel (0) target = $region37
  $region36: #{autoencoder_forward.1} parent=0 // pred_region
    _
  $region37: #{autoencoder_forward.1} parent=0 // pred_fallthru
    _
  // Predicated region
  $region38: #{autoencoder_forward.1} parent=0 // pred_check
    _
  $region39: #{autoencoder_forward.1} parent=0 // pred_check_branch
    %35 = sbr.rel (0) target = $region41
  $region40: #{autoencoder_forward.1} parent=0 // pred_region
    _
  $region41: #{autoencoder_forward.1} parent=0 // pred_fallthru
    _
  // Predicated region
  $region42: #{autoencoder_forward.1} parent=0 // pred_check
    _
  $region43: #{autoencoder_forward.1} parent=0 // pred_check_branch
    %37 = sbr.rel (0) target = $region45
  $region44: #{autoencoder_forward.1} parent=0 // pred_region
    _
  $region45: #{autoencoder_forward.1} parent=0 // pred_fallthru
    _
  %v39 = vld [vmem:[%s0] sm:$0xff]
  %v40 = vld [vmem:[%s0 + $0x8] sm:$0xff]
  %v41 = vpack.c.bf16 %v40, %v39
  %v42 = vld [vmem:[%s1] sm:$0xff]
  %v43 = vld [vmem:[%s1 + $0x8] sm:$0xff]
  %v44 = vld [vmem:[%s1 + $0x10] sm:$0xff]
  %v45 = vld [vmem:[%s1 + $0x18] sm:$0xff]
  %v46 = vld [vmem:[%s1 + $0x20] sm:$0xff]
  %v47 = vld [vmem:[%s1 + $0x28] sm:$0xff]
  %v48 = vld [vmem:[%s1 + $0x30] sm:$0xff]
  %v49 = vld [vmem:[%s1 + $0x38] sm:$0xff]
  %v50 = vld [vmem:[%s1 + $0x40] sm:$0xff]
  %v51 = vld [vmem:[%s1 + $0x48] sm:$0xff]
  %v52 = vld [vmem:[%s1 + $0x50] sm:$0xff]
  %v53 = vld [vmem:[%s1 + $0x58] sm:$0xff]
  %v54 = vld [vmem:[%s1 + $0x60] sm:$0xff]
  %v55 = vld [vmem:[%s1 + $0x68] sm:$0xff]
  %v56 = vld [vmem:[%s1 + $0x70] sm:$0xff]
  %v57 = vld [vmem:[%s1 + $0x78] sm:$0xff]
  %v58 = vld [vmem:[%s2] sm:$0xf]
  %v60 = vlaneseq
  %v61 = vshrl.u32 %v60, 7
  %v62 = vsub.s32 0, %v61
  %v63 = vrot.slane %v58, %v62
  %v64 = vlaneseq
  %v65 = vshrl.u32 %v64, 7
  %v66 = vsub.s32 1, %v65
  %v67 = vrot.slane %v58, %v66
  %v68 = vlaneseq
  %v69 = vshrl.u32 %v68, 7
  %v70 = vsub.s32 2, %v69
  %v71 = vrot.slane %v58, %v70
  %v72 = vlaneseq
  %v73 = vshrl.u32 %v72, 7
  %v74 = vsub.s32 3, %v73
  %v75 = vrot.slane %v58, %v74
  %v96 = vunpack.c.l.b16 %v42
  %v97 = vunpack.c.h.b16 %v42
  %v98 = vunpack.c.l.b16 %v43
  %v99 = vunpack.c.h.b16 %v43
  %v100 = vunpack.c.l.b16 %v44
  %v101 = vunpack.c.h.b16 %v44
  %v102 = vunpack.c.l.b16 %v45
  %v103 = vunpack.c.h.b16 %v45
  %v104 = vunpack.c.l.b16 %v46
  %v105 = vunpack.c.h.b16 %v46
  %v106 = vunpack.c.l.b16 %v47
  %v107 = vunpack.c.h.b16 %v47
  %v108 = vunpack.c.l.b16 %v48
  %v109 = vunpack.c.h.b16 %v48
  %v110 = vunpack.c.l.b16 %v49
  %v111 = vunpack.c.h.b16 %v49
  %v112 = vunpack.c.l.b16 %v50
  %v113 = vunpack.c.h.b16 %v50
  %v114 = vunpack.c.l.b16 %v51
  %v115 = vunpack.c.h.b16 %v51
  %v116 = vunpack.c.l.b16 %v52
  %v117 = vunpack.c.h.b16 %v52
  %v118 = vunpack.c.l.b16 %v53
  %v119 = vunpack.c.h.b16 %v53
  %v120 = vunpack.c.l.b16 %v54
  %v121 = vunpack.c.h.b16 %v54
  %v122 = vunpack.c.l.b16 %v55
  %v123 = vunpack.c.h.b16 %v55
  %v124 = vunpack.c.l.b16 %v56
  %v125 = vunpack.c.h.b16 %v56
  %v126 = vunpack.c.l.b16 %v57
  %v127 = vunpack.c.h.b16 %v57
  %v128 = vpack.c.b16 %v100, %v96
  %v129 = vpack.c.b16 %v101, %v97
  %v130 = vpack.c.b16 %v102, %v98
  %v131 = vpack.c.b16 %v103, %v99
  %v132 = vpack.c.b16 %v108, %v104
  %v133 = vpack.c.b16 %v109, %v105
  %v134 = vpack.c.b16 %v110, %v106
  %v135 = vpack.c.b16 %v111, %v107
  %v136 = vpack.c.b16 %v116, %v112
  %v137 = vpack.c.b16 %v117, %v113
  %v138 = vpack.c.b16 %v118, %v114
  %v139 = vpack.c.b16 %v119, %v115
  %v140 = vpack.c.b16 %v124, %v120
  %v141 = vpack.c.b16 %v125, %v121
  %v142 = vpack.c.b16 %v126, %v122
  %v143 = vpack.c.b16 %v127, %v123
  %vm160 = vcmask 523264
  %v162 = vsel %vm160, %v41, 0
  %164 = vmatprep.subr.bf16.mxu0 0
  %165 = vmatpush1.bf16.msra.mxu0 0
  %166 = vmatprep.subr.bf16.mxu0 0
  %167 = vmatpush1.bf16.msra.mxu0 0
  %168 = vmatprep.subr.bf16.mxu0 0
  %169 = vmatpush1.bf16.msra.mxu0 0
  %170 = vmatprep.subr.bf16.mxu0 0
  %171 = vmatpush1.bf16.msra.mxu0 0
  %172 = vmatprep.subr.bf16.mxu0 %v141
  %173 = vmatpush1.bf16.msra.mxu0 %v140
  %174 = vmatprep.subr.bf16.mxu0 %v137
  %175 = vmatpush1.bf16.msra.mxu0 %v136
  %176 = vmatprep.subr.bf16.mxu0 %v133
  %177 = vmatpush1.bf16.msra.mxu0 %v132
  %178 = vmatprep.subr.bf16.mxu0 %v129
  %179 = vmatpush1.bf16.msra.mxu0 %v128
  %180 = vmatprep.subr.bf16.mxu0 0
  %181 = vmatpush2.bf16.msra.mxu0 0
  %182 = vmatprep.subr.bf16.mxu0 0
  %183 = vmatpush2.bf16.msra.mxu0 0
  %184 = vmatprep.subr.bf16.mxu0 0
  %185 = vmatpush2.bf16.msra.mxu0 0
  %186 = vmatprep.subr.bf16.mxu0 0
  %187 = vmatpush2.bf16.msra.mxu0 0
  %188 = vmatprep.subr.bf16.mxu0 0
  %189 = vmatpush2.bf16.msra.mxu0 0
  %190 = vmatprep.subr.bf16.mxu0 0
  %191 = vmatpush2.bf16.msra.mxu0 0
  %192 = vmatprep.subr.bf16.mxu0 0
  %193 = vmatpush2.bf16.msra.mxu0 0
  %194 = vmatprep.subr.bf16.mxu0 0
  %195 = vmatpush2.bf16.msra.mxu0 0
  %196 = vmatprep.mubr.bf16.mxu0 0
  %197 = vmatmul.mubr.bf16.gmra.mxu0 %v162
  %v198 = vpop.f32.mrf.mxu0
  %v199 = vadd.f32 %v63, %v198
  %v200 = vpop.f32.mrf.mxu0
  %v201 = vadd.f32 %v67, %v200
  %v202 = vpop.f32.mrf.mxu0
  %v203 = vadd.f32 %v63, %v202
  %v204 = vpop.f32.mrf.mxu0
  %v205 = vadd.f32 %v67, %v204
  %206 = vdwg.mxu0
  %207 = vmatprep.subr.bf16.mxu0 0
  %208 = vmatpush1.bf16.msra.mxu0 0
  %209 = vmatprep.subr.bf16.mxu0 0
  %210 = vmatpush1.bf16.msra.mxu0 0
  %211 = vmatprep.subr.bf16.mxu0 0
  %212 = vmatpush1.bf16.msra.mxu0 0
  %213 = vmatprep.subr.bf16.mxu0 0
  %214 = vmatpush1.bf16.msra.mxu0 0
  %215 = vmatprep.subr.bf16.mxu0 %v143
  %216 = vmatpush1.bf16.msra.mxu0 %v142
  %217 = vmatprep.subr.bf16.mxu0 %v139
  %218 = vmatpush1.bf16.msra.mxu0 %v138
  %219 = vmatprep.subr.bf16.mxu0 %v135
  %220 = vmatpush1.bf16.msra.mxu0 %v134
  %221 = vmatprep.subr.bf16.mxu0 %v131
  %222 = vmatpush1.bf16.msra.mxu0 %v130
  %223 = vmatprep.subr.bf16.mxu0 0
  %224 = vmatpush2.bf16.msra.mxu0 0
  %225 = vmatprep.subr.bf16.mxu0 0
  %226 = vmatpush2.bf16.msra.mxu0 0
  %227 = vmatprep.subr.bf16.mxu0 0
  %228 = vmatpush2.bf16.msra.mxu0 0
  %229 = vmatprep.subr.bf16.mxu0 0
  %230 = vmatpush2.bf16.msra.mxu0 0
  %231 = vmatprep.subr.bf16.mxu0 0
  %232 = vmatpush2.bf16.msra.mxu0 0
  %233 = vmatprep.subr.bf16.mxu0 0
  %234 = vmatpush2.bf16.msra.mxu0 0
  %235 = vmatprep.subr.bf16.mxu0 0
  %236 = vmatpush2.bf16.msra.mxu0 0
  %237 = vmatprep.subr.bf16.mxu0 0
  %238 = vmatpush2.bf16.msra.mxu0 0
  %239 = vmatprep.mubr.bf16.mxu0 0
  %240 = vmatmul.mubr.bf16.gmra.mxu0 %v162
  %v241 = vpop.f32.mrf.mxu0
  %v242 = vadd.f32 %v71, %v241
  %v243 = vpop.f32.mrf.mxu0
  %v244 = vadd.f32 %v75, %v243
  %v245 = vpop.f32.mrf.mxu0
  %v246 = vadd.f32 %v71, %v245
  %v247 = vpop.f32.mrf.mxu0
  %v248 = vadd.f32 %v75, %v247
  %249 = vdwg.mxu0
  %v250 = vmax.f32 %v199, 0.0
  %v251 = vmax.f32 %v201, 0.0
  %v252 = vmax.f32 %v242, 0.0
  %v253 = vmax.f32 %v244, 0.0
  %v254 = vmax.f32 %v203, 0.0
  %v255 = vmax.f32 %v205, 0.0
  %v256 = vmax.f32 %v246, 0.0
  %v257 = vmax.f32 %v248, 0.0
  %v258 = vpack.c.bf16 %v254, %v250
  %v259 = vpack.c.bf16 %v255, %v251
  %v260 = vpack.c.bf16 %v256, %v252
  %v261 = vpack.c.bf16 %v257, %v253
  %v262 = vld [vmem:[%s3] sm:$0xf]
  %v263 = vld [vmem:[%s3 + $0x4] sm:$0xf]
  %v264 = vld [vmem:[%s3 + $0x8] sm:$0xf]
  %v265 = vld [vmem:[%s3 + $0xc] sm:$0xf]
  %v266 = vld [vmem:[%s3 + $0x10] sm:$0xf]
  %v267 = vld [vmem:[%s3 + $0x14] sm:$0xf]
  %v268 = vld [vmem:[%s3 + $0x18] sm:$0xf]
  %v269 = vld [vmem:[%s3 + $0x1c] sm:$0xf]
  %v270 = vld [vmem:[%s3 + $0x20] sm:$0xf]
  %v271 = vld [vmem:[%s3 + $0x24] sm:$0xf]
  %v272 = vld [vmem:[%s3 + $0x28] sm:$0xf]
  %v273 = vld [vmem:[%s3 + $0x2c] sm:$0xf]
  %v274 = vld [vmem:[%s3 + $0x30] sm:$0xf]
  %v275 = vld [vmem:[%s3 + $0x34] sm:$0xf]
  %v276 = vld [vmem:[%s3 + $0x38] sm:$0xf]
  %v277 = vld [vmem:[%s3 + $0x3c] sm:$0xf]
  %v278 = vld [vmem:[%s3 + $0x40] sm:$0xf]
  %v279 = vld [vmem:[%s3 + $0x44] sm:$0xf]
  %v280 = vld [vmem:[%s3 + $0x48] sm:$0xf]
  %v281 = vld [vmem:[%s3 + $0x4c] sm:$0xf]
  %v282 = vld [vmem:[%s3 + $0x50] sm:$0xf]
  %v283 = vld [vmem:[%s3 + $0x54] sm:$0xf]
  %v284 = vld [vmem:[%s3 + $0x58] sm:$0xf]
  %v285 = vld [vmem:[%s3 + $0x5c] sm:$0xf]
  %v286 = vld [vmem:[%s3 + $0x60] sm:$0xf]
  %v287 = vld [vmem:[%s3 + $0x64] sm:$0xf]
  %v288 = vld [vmem:[%s3 + $0x68] sm:$0xf]
  %v289 = vld [vmem:[%s3 + $0x6c] sm:$0xf]
  %v290 = vld [vmem:[%s3 + $0x70] sm:$0xf]
  %v291 = vld [vmem:[%s3 + $0x74] sm:$0xf]
  %v292 = vld [vmem:[%s3 + $0x78] sm:$0xf]
  %v293 = vld [vmem:[%s3 + $0x7c] sm:$0xf]
  %v294 = vld [vmem:[%s3 + $0x80] sm:$0xf]
  %v295 = vld [vmem:[%s3 + $0x84] sm:$0xf]
  %v296 = vld [vmem:[%s3 + $0x88] sm:$0xf]
  %v297 = vld [vmem:[%s3 + $0x8c] sm:$0xf]
  %v298 = vld [vmem:[%s3 + $0x90] sm:$0xf]
  %v299 = vld [vmem:[%s3 + $0x94] sm:$0xf]
  %v300 = vld [vmem:[%s3 + $0x98] sm:$0xf]
  %v301 = vld [vmem:[%s3 + $0x9c] sm:$0xf]
  %v302 = vld [vmem:[%s3 + $0xa0] sm:$0xf]
  %v303 = vld [vmem:[%s3 + $0xa4] sm:$0xf]
  %v304 = vld [vmem:[%s3 + $0xa8] sm:$0xf]
  %v305 = vld [vmem:[%s3 + $0xac] sm:$0xf]
  %v306 = vld [vmem:[%s3 + $0xb0] sm:$0xf]
  %v307 = vld [vmem:[%s3 + $0xb4] sm:$0xf]
  %v308 = vld [vmem:[%s3 + $0xb8] sm:$0xf]
  %v309 = vld [vmem:[%s3 + $0xbc] sm:$0xf]
  %v310 = vld [vmem:[%s3 + $0xc0] sm:$0xf]
  %v311 = vld [vmem:[%s3 + $0xc4] sm:$0xf]
  %v312 = vld [vmem:[%s3 + $0xc8] sm:$0xf]
  %v313 = vld [vmem:[%s3 + $0xcc] sm:$0xf]
  %v314 = vld [vmem:[%s3 + $0xd0] sm:$0xf]
  %v315 = vld [vmem:[%s3 + $0xd4] sm:$0xf]
  %v316 = vld [vmem:[%s3 + $0xd8] sm:$0xf]
  %v317 = vld [vmem:[%s3 + $0xdc] sm:$0xf]
  %v318 = vld [vmem:[%s3 + $0xe0] sm:$0xf]
  %v319 = vld [vmem:[%s3 + $0xe4] sm:$0xf]
  %v320 = vld [vmem:[%s3 + $0xe8] sm:$0xf]
  %v321 = vld [vmem:[%s3 + $0xec] sm:$0xf]
  %v322 = vld [vmem:[%s3 + $0xf0] sm:$0xf]
  %v323 = vld [vmem:[%s3 + $0xf4] sm:$0xf]
  %v324 = vld [vmem:[%s3 + $0xf8] sm:$0xf]
  %v325 = vld [vmem:[%s3 + $0xfc] sm:$0xf]
  %v326 = vld [vmem:[%s4] sm:$0x1]
  %v328 = vlaneseq
  %v329 = vshrl.u32 %v328, 7
  %v330 = vsub.s32 0, %v329
  %v331 = vrot.slane %v326, %v330
  %v397 = vunpack.c.l.b16 %v262
  %v398 = vunpack.c.l.b16 %v263
  %v399 = vunpack.c.l.b16 %v264
  %v400 = vunpack.c.l.b16 %v265
  %v401 = vunpack.c.l.b16 %v266
  %v402 = vunpack.c.l.b16 %v267
  %v403 = vunpack.c.l.b16 %v268
  %v404 = vunpack.c.l.b16 %v269
  %v405 = vunpack.c.l.b16 %v270
  %v406 = vunpack.c.l.b16 %v271
  %v407 = vunpack.c.l.b16 %v272
  %v408 = vunpack.c.l.b16 %v273
  %v409 = vunpack.c.l.b16 %v274
  %v410 = vunpack.c.l.b16 %v275
  %v411 = vunpack.c.l.b16 %v276
  %v412 = vunpack.c.l.b16 %v277
  %v413 = vunpack.c.l.b16 %v278
  %v414 = vunpack.c.l.b16 %v279
  %v415 = vunpack.c.l.b16 %v280
  %v416 = vunpack.c.l.b16 %v281
  %v417 = vunpack.c.l.b16 %v282
  %v418 = vunpack.c.l.b16 %v283
  %v419 = vunpack.c.l.b16 %v284
  %v420 = vunpack.c.l.b16 %v285
  %v421 = vunpack.c.l.b16 %v286
  %v422 = vunpack.c.l.b16 %v287
  %v423 = vunpack.c.l.b16 %v288
  %v424 = vunpack.c.l.b16 %v289
  %v425 = vunpack.c.l.b16 %v290
  %v426 = vunpack.c.l.b16 %v291
  %v427 = vunpack.c.l.b16 %v292
  %v428 = vunpack.c.l.b16 %v293
  %v429 = vunpack.c.l.b16 %v294
  %v430 = vunpack.c.l.b16 %v295
  %v431 = vunpack.c.l.b16 %v296
  %v432 = vunpack.c.l.b16 %v297
  %v433 = vunpack.c.l.b16 %v298
  %v434 = vunpack.c.l.b16 %v299
  %v435 = vunpack.c.l.b16 %v300
  %v436 = vunpack.c.l.b16 %v301
  %v437 = vunpack.c.l.b16 %v302
  %v438 = vunpack.c.l.b16 %v303
  %v439 = vunpack.c.l.b16 %v304
  %v440 = vunpack.c.l.b16 %v305
  %v441 = vunpack.c.l.b16 %v306
  %v442 = vunpack.c.l.b16 %v307
  %v443 = vunpack.c.l.b16 %v308
  %v444 = vunpack.c.l.b16 %v309
  %v445 = vunpack.c.l.b16 %v310
  %v446 = vunpack.c.l.b16 %v311
  %v447 = vunpack.c.l.b16 %v312
  %v448 = vunpack.c.l.b16 %v313
  %v449 = vunpack.c.l.b16 %v314
  %v450 = vunpack.c.l.b16 %v315
  %v451 = vunpack.c.l.b16 %v316
  %v452 = vunpack.c.l.b16 %v317
  %v453 = vunpack.c.l.b16 %v318
  %v454 = vunpack.c.l.b16 %v319
  %v455 = vunpack.c.l.b16 %v320
  %v456 = vunpack.c.l.b16 %v321
  %v457 = vunpack.c.l.b16 %v322
  %v458 = vunpack.c.l.b16 %v323
  %v459 = vunpack.c.l.b16 %v324
  %v460 = vunpack.c.l.b16 %v325
  %v461 = vpack.c.b16 %v398, %v397
  %v462 = vpack.c.b16 %v400, %v399
  %v463 = vpack.c.b16 %v402, %v401
  %v464 = vpack.c.b16 %v404, %v403
  %v465 = vpack.c.b16 %v406, %v405
  %v466 = vpack.c.b16 %v408, %v407
  %v467 = vpack.c.b16 %v410, %v409
  %v468 = vpack.c.b16 %v412, %v411
  %v469 = vpack.c.b16 %v414, %v413
  %v470 = vpack.c.b16 %v416, %v415
  %v471 = vpack.c.b16 %v418, %v417
  %v472 = vpack.c.b16 %v420, %v419
  %v473 = vpack.c.b16 %v422, %v421
  %v474 = vpack.c.b16 %v424, %v423
  %v475 = vpack.c.b16 %v426, %v425
  %v476 = vpack.c.b16 %v428, %v427
  %v477 = vpack.c.b16 %v430, %v429
  %v478 = vpack.c.b16 %v432, %v431
  %v479 = vpack.c.b16 %v434, %v433
  %v480 = vpack.c.b16 %v436, %v435
  %v481 = vpack.c.b16 %v438, %v437
  %v482 = vpack.c.b16 %v440, %v439
  %v483 = vpack.c.b16 %v442, %v441
  %v484 = vpack.c.b16 %v444, %v443
  %v485 = vpack.c.b16 %v446, %v445
  %v486 = vpack.c.b16 %v448, %v447
  %v487 = vpack.c.b16 %v450, %v449
  %v488 = vpack.c.b16 %v452, %v451
  %v489 = vpack.c.b16 %v454, %v453
  %v490 = vpack.c.b16 %v456, %v455
  %v491 = vpack.c.b16 %v458, %v457
  %v492 = vpack.c.b16 %v460, %v459
  %525 = vmatprep.subr.bf16.mxu0 0
  %526 = vmatpush1.bf16.msra.mxu0 %v468
  %527 = vmatprep.subr.bf16.mxu0 0
  %528 = vmatpush1.bf16.msra.mxu0 %v467
  %529 = vmatprep.subr.bf16.mxu0 0
  %530 = vmatpush1.bf16.msra.mxu0 %v466
  %531 = vmatprep.subr.bf16.mxu0 0
  %532 = vmatpush1.bf16.msra.mxu0 %v465
  %533 = vmatprep.subr.bf16.mxu0 0
  %534 = vmatpush1.bf16.msra.mxu0 %v464
  %535 = vmatprep.subr.bf16.mxu0 0
  %536 = vmatpush1.bf16.msra.mxu0 %v463
  %537 = vmatprep.subr.bf16.mxu0 0
  %538 = vmatpush1.bf16.msra.mxu0 %v462
  %539 = vmatprep.subr.bf16.mxu0 0
  %540 = vmatpush1.bf16.msra.mxu0 %v461
  %541 = vmatprep.subr.bf16.mxu0 0
  %542 = vmatpush2.bf16.msra.mxu0 %v476
  %543 = vmatprep.subr.bf16.mxu0 0
  %544 = vmatpush2.bf16.msra.mxu0 %v475
  %545 = vmatprep.subr.bf16.mxu0 0
  %546 = vmatpush2.bf16.msra.mxu0 %v474
  %547 = vmatprep.subr.bf16.mxu0 0
  %548 = vmatpush2.bf16.msra.mxu0 %v473
  %549 = vmatprep.subr.bf16.mxu0 0
  %550 = vmatpush2.bf16.msra.mxu0 %v472
  %551 = vmatprep.subr.bf16.mxu0 0
  %552 = vmatpush2.bf16.msra.mxu0 %v471
  %553 = vmatprep.subr.bf16.mxu0 0
  %554 = vmatpush2.bf16.msra.mxu0 %v470
  %555 = vmatprep.subr.bf16.mxu0 0
  %556 = vmatpush2.bf16.msra.mxu0 %v469
  %557 = vmatprep.mubr.bf16.mxu0 %v259
  %558 = vmatmul.mubr.bf16.gmra.mxu0 %v258
  %v559 = vpop.f32.mrf.mxu0
  %v560 = vadd.f32 %v331, %v559
  %v561 = vpop.f32.mrf.mxu0
  %v562 = vpop.f32.mrf.mxu0
  %v563 = vadd.f32 %v331, %v562
  %v564 = vpop.f32.mrf.mxu0
  %565 = vdwg.mxu0
  %566 = vmatprep.subr.bf16.mxu0 0
  %567 = vmatpush1.bf16.msra.mxu0 %v484
  %568 = vmatprep.subr.bf16.mxu0 0
  %569 = vmatpush1.bf16.msra.mxu0 %v483
  %570 = vmatprep.subr.bf16.mxu0 0
  %571 = vmatpush1.bf16.msra.mxu0 %v482
  %572 = vmatprep.subr.bf16.mxu0 0
  %573 = vmatpush1.bf16.msra.mxu0 %v481
  %574 = vmatprep.subr.bf16.mxu0 0
  %575 = vmatpush1.bf16.msra.mxu0 %v480
  %576 = vmatprep.subr.bf16.mxu0 0
  %577 = vmatpush1.bf16.msra.mxu0 %v479
  %578 = vmatprep.subr.bf16.mxu0 0
  %579 = vmatpush1.bf16.msra.mxu0 %v478
  %580 = vmatprep.subr.bf16.mxu0 0
  %581 = vmatpush1.bf16.msra.mxu0 %v477
  %582 = vmatprep.subr.bf16.mxu0 0
  %583 = vmatpush2.bf16.msra.mxu0 %v492
  %584 = vmatprep.subr.bf16.mxu0 0
  %585 = vmatpush2.bf16.msra.mxu0 %v491
  %586 = vmatprep.subr.bf16.mxu0 0
  %587 = vmatpush2.bf16.msra.mxu0 %v490
  %588 = vmatprep.subr.bf16.mxu0 0
  %589 = vmatpush2.bf16.msra.mxu0 %v489
  %590 = vmatprep.subr.bf16.mxu0 0
  %591 = vmatpush2.bf16.msra.mxu0 %v488
  %592 = vmatprep.subr.bf16.mxu0 0
  %593 = vmatpush2.bf16.msra.mxu0 %v487
  %594 = vmatprep.subr.bf16.mxu0 0
  %595 = vmatpush2.bf16.msra.mxu0 %v486
  %596 = vmatprep.subr.bf16.mxu0 0
  %597 = vmatpush2.bf16.msra.mxu0 %v485
  %598 = vmatprep.mubr.bf16.mxu0 %v261
  %599 = vmatmul.mubr.bf16.gmra.mxu0 %v260
  %v600 = vpop.f32.mrf.mxu0
  %v601 = vadd.f32 %v560, %v600
  %v602 = vpop.f32.mrf.mxu0
  %v603 = vpop.f32.mrf.mxu0
  %v604 = vadd.f32 %v563, %v603
  %v605 = vpop.f32.mrf.mxu0
  %606 = vdwg.mxu0
  %v607 = vmax.f32 %v601, 0.0
  %v608 = vmax.f32 %v604, 0.0
  %v609 = vpack.c.bf16 %v608, %v607
  %v610 = vld [vmem:[%s5] sm:$0xf]
  %v611 = vld [vmem:[%s5 + $0x4] sm:$0xf]
  %v612 = vld [vmem:[%s5 + $0x8] sm:$0xf]
  %v613 = vld [vmem:[%s5 + $0xc] sm:$0xf]
  %v614 = vld [vmem:[%s5 + $0x10] sm:$0xf]
  %v615 = vld [vmem:[%s5 + $0x14] sm:$0xf]
  %v616 = vld [vmem:[%s5 + $0x18] sm:$0xf]
  %v617 = vld [vmem:[%s5 + $0x1c] sm:$0xf]
  %v618 = vld [vmem:[%s5 + $0x20] sm:$0xf]
  %v619 = vld [vmem:[%s5 + $0x24] sm:$0xf]
  %v620 = vld [vmem:[%s5 + $0x28] sm:$0xf]
  %v621 = vld [vmem:[%s5 + $0x2c] sm:$0xf]
  %v622 = vld [vmem:[%s5 + $0x30] sm:$0xf]
  %v623 = vld [vmem:[%s5 + $0x34] sm:$0xf]
  %v624 = vld [vmem:[%s5 + $0x38] sm:$0xf]
  %v625 = vld [vmem:[%s5 + $0x3c] sm:$0xf]
  %v626 = vld [vmem:[%s6] sm:$0x1]
  %v628 = vlaneseq
  %v629 = vshrl.u32 %v628, 7
  %v630 = vsub.s32 0, %v629
  %v631 = vrot.slane %v626, %v630
  %v649 = vunpack.c.l.b16 %v610
  %v650 = vunpack.c.l.b16 %v611
  %v651 = vunpack.c.l.b16 %v612
  %v652 = vunpack.c.l.b16 %v613
  %v653 = vunpack.c.l.b16 %v614
  %v654 = vunpack.c.l.b16 %v615
  %v655 = vunpack.c.l.b16 %v616
  %v656 = vunpack.c.l.b16 %v617
  %v657 = vunpack.c.l.b16 %v618
  %v658 = vunpack.c.l.b16 %v619
  %v659 = vunpack.c.l.b16 %v620
  %v660 = vunpack.c.l.b16 %v621
  %v661 = vunpack.c.l.b16 %v622
  %v662 = vunpack.c.l.b16 %v623
  %v663 = vunpack.c.l.b16 %v624
  %v664 = vunpack.c.l.b16 %v625
  %v665 = vpack.c.b16 %v650, %v649
  %v666 = vpack.c.b16 %v652, %v651
  %v667 = vpack.c.b16 %v654, %v653
  %v668 = vpack.c.b16 %v656, %v655
  %v669 = vpack.c.b16 %v658, %v657
  %v670 = vpack.c.b16 %v660, %v659
  %v671 = vpack.c.b16 %v662, %v661
  %v672 = vpack.c.b16 %v664, %v663
  %681 = vmatprep.subr.bf16.mxu0 0
  %682 = vmatpush1.bf16.msra.mxu0 %v672
  %683 = vmatprep.subr.bf16.mxu0 0
  %684 = vmatpush1.bf16.msra.mxu0 %v671
  %685 = vmatprep.subr.bf16.mxu0 0
  %686 = vmatpush1.bf16.msra.mxu0 %v670
  %687 = vmatprep.subr.bf16.mxu0 0
  %688 = vmatpush1.bf16.msra.mxu0 %v669
  %689 = vmatprep.subr.bf16.mxu0 0
  %690 = vmatpush1.bf16.msra.mxu0 %v668
  %691 = vmatprep.subr.bf16.mxu0 0
  %692 = vmatpush1.bf16.msra.mxu0 %v667
  %693 = vmatprep.subr.bf16.mxu0 0
  %694 = vmatpush1.bf16.msra.mxu0 %v666
  %695 = vmatprep.subr.bf16.mxu0 0
  %696 = vmatpush1.bf16.msra.mxu0 %v665
  %697 = vmatprep.subr.bf16.mxu0 0
  %698 = vmatpush2.bf16.msra.mxu0 0
  %699 = vmatprep.subr.bf16.mxu0 0
  %700 = vmatpush2.bf16.msra.mxu0 0
  %701 = vmatprep.subr.bf16.mxu0 0
  %702 = vmatpush2.bf16.msra.mxu0 0
  %703 = vmatprep.subr.bf16.mxu0 0
  %704 = vmatpush2.bf16.msra.mxu0 0
  %705 = vmatprep.subr.bf16.mxu0 0
  %706 = vmatpush2.bf16.msra.mxu0 0
  %707 = vmatprep.subr.bf16.mxu0 0
  %708 = vmatpush2.bf16.msra.mxu0 0
  %709 = vmatprep.subr.bf16.mxu0 0
  %710 = vmatpush2.bf16.msra.mxu0 0
  %711 = vmatprep.subr.bf16.mxu0 0
  %712 = vmatpush2.bf16.msra.mxu0 0
  %713 = vmatprep.mubr.bf16.mxu0 0
  %714 = vmatmul.mubr.bf16.gmra.mxu0 %v609
  %v715 = vpop.f32.mrf.mxu0
  %v716 = vadd.f32 %v631, %v715
  %v717 = vpop.f32.mrf.mxu0
  %v718 = vpop.f32.mrf.mxu0
  %v719 = vadd.f32 %v631, %v718
  %v720 = vpop.f32.mrf.mxu0
  %721 = vdwg.mxu0
  %v722 = vmax.f32 %v716, 0.0
  %v723 = vmax.f32 %v719, 0.0
  %v724 = vpack.c.bf16 %v723, %v722
  %v725 = vld [vmem:[%s7] sm:$0xff]
  %v726 = vld [vmem:[%s7 + $0x8] sm:$0xff]
  %v727 = vld [vmem:[%s7 + $0x10] sm:$0xff]
  %v728 = vld [vmem:[%s7 + $0x18] sm:$0xff]
  %v729 = vld [vmem:[%s7 + $0x20] sm:$0xff]
  %v730 = vld [vmem:[%s7 + $0x28] sm:$0xff]
  %v731 = vld [vmem:[%s7 + $0x30] sm:$0xff]
  %v732 = vld [vmem:[%s7 + $0x38] sm:$0xff]
  %v733 = vld [vmem:[%s7 + $0x40] sm:$0xff]
  %v734 = vld [vmem:[%s7 + $0x48] sm:$0xff]
  %v735 = vld [vmem:[%s7 + $0x50] sm:$0xff]
  %v736 = vld [vmem:[%s7 + $0x58] sm:$0xff]
  %v737 = vld [vmem:[%s7 + $0x60] sm:$0xff]
  %v738 = vld [vmem:[%s7 + $0x68] sm:$0xff]
  %v739 = vld [vmem:[%s7 + $0x70] sm:$0xff]
  %v740 = vld [vmem:[%s7 + $0x78] sm:$0xff]
  %v741 = vld [vmem:[%s7 + $0x80] sm:$0xff]
  %v742 = vld [vmem:[%s7 + $0x88] sm:$0xff]
  %v743 = vld [vmem:[%s7 + $0x90] sm:$0xff]
  %v744 = vld [vmem:[%s7 + $0x98] sm:$0xff]
  %v745 = vld [vmem:[%s7 + $0xa0] sm:$0xff]
  %v746 = vld [vmem:[%s7 + $0xa8] sm:$0xff]
  %v747 = vld [vmem:[%s7 + $0xb0] sm:$0xff]
  %v748 = vld [vmem:[%s7 + $0xb8] sm:$0xff]
  %v749 = vld [vmem:[%s7 + $0xc0] sm:$0xff]
  %v750 = vld [vmem:[%s7 + $0xc8] sm:$0xff]
  %v751 = vld [vmem:[%s7 + $0xd0] sm:$0xff]
  %v752 = vld [vmem:[%s7 + $0xd8] sm:$0xff]
  %v753 = vld [vmem:[%s7 + $0xe0] sm:$0xff]
  %v754 = vld [vmem:[%s7 + $0xe8] sm:$0xff]
  %v755 = vld [vmem:[%s7 + $0xf0] sm:$0xff]
  %v756 = vld [vmem:[%s7 + $0xf8] sm:$0xff]
  %v757 = vld [vmem:[%s8] sm:$0xf]
  %v759 = vlaneseq
  %v760 = vshrl.u32 %v759, 7
  %v761 = vsub.s32 0, %v760
  %v762 = vrot.slane %v757, %v761
  %v763 = vlaneseq
  %v764 = vshrl.u32 %v763, 7
  %v765 = vsub.s32 1, %v764
  %v766 = vrot.slane %v757, %v765
  %v767 = vlaneseq
  %v768 = vshrl.u32 %v767, 7
  %v769 = vsub.s32 2, %v768
  %v770 = vrot.slane %v757, %v769
  %v771 = vlaneseq
  %v772 = vshrl.u32 %v771, 7
  %v773 = vsub.s32 3, %v772
  %v774 = vrot.slane %v757, %v773
  %v811 = vunpack.c.l.b16 %v725
  %v812 = vunpack.c.h.b16 %v725
  %v813 = vunpack.c.l.b16 %v726
  %v814 = vunpack.c.h.b16 %v726
  %v815 = vunpack.c.l.b16 %v727
  %v816 = vunpack.c.h.b16 %v727
  %v817 = vunpack.c.l.b16 %v728
  %v818 = vunpack.c.h.b16 %v728
  %v819 = vunpack.c.l.b16 %v729
  %v820 = vunpack.c.h.b16 %v729
  %v821 = vunpack.c.l.b16 %v730
  %v822 = vunpack.c.h.b16 %v730
  %v823 = vunpack.c.l.b16 %v731
  %v824 = vunpack.c.h.b16 %v731
  %v825 = vunpack.c.l.b16 %v732
  %v826 = vunpack.c.h.b16 %v732
  %v827 = vunpack.c.l.b16 %v733
  %v828 = vunpack.c.h.b16 %v733
  %v829 = vunpack.c.l.b16 %v734
  %v830 = vunpack.c.h.b16 %v734
  %v831 = vunpack.c.l.b16 %v735
  %v832 = vunpack.c.h.b16 %v735
  %v833 = vunpack.c.l.b16 %v736
  %v834 = vunpack.c.h.b16 %v736
  %v835 = vunpack.c.l.b16 %v737
  %v836 = vunpack.c.h.b16 %v737
  %v837 = vunpack.c.l.b16 %v738
  %v838 = vunpack.c.h.b16 %v738
  %v839 = vunpack.c.l.b16 %v739
  %v840 = vunpack.c.h.b16 %v739
  %v841 = vunpack.c.l.b16 %v740
  %v842 = vunpack.c.h.b16 %v740
  %v843 = vunpack.c.l.b16 %v741
  %v844 = vunpack.c.h.b16 %v741
  %v845 = vunpack.c.l.b16 %v742
  %v846 = vunpack.c.h.b16 %v742
  %v847 = vunpack.c.l.b16 %v743
  %v848 = vunpack.c.h.b16 %v743
  %v849 = vunpack.c.l.b16 %v744
  %v850 = vunpack.c.h.b16 %v744
  %v851 = vunpack.c.l.b16 %v745
  %v852 = vunpack.c.h.b16 %v745
  %v853 = vunpack.c.l.b16 %v746
  %v854 = vunpack.c.h.b16 %v746
  %v855 = vunpack.c.l.b16 %v747
  %v856 = vunpack.c.h.b16 %v747
  %v857 = vunpack.c.l.b16 %v748
  %v858 = vunpack.c.h.b16 %v748
  %v859 = vunpack.c.l.b16 %v749
  %v860 = vunpack.c.h.b16 %v749
  %v861 = vunpack.c.l.b16 %v750
  %v862 = vunpack.c.h.b16 %v750
  %v863 = vunpack.c.l.b16 %v751
  %v864 = vunpack.c.h.b16 %v751
  %v865 = vunpack.c.l.b16 %v752
  %v866 = vunpack.c.h.b16 %v752
  %v867 = vunpack.c.l.b16 %v753
  %v868 = vunpack.c.h.b16 %v753
  %v869 = vunpack.c.l.b16 %v754
  %v870 = vunpack.c.h.b16 %v754
  %v871 = vunpack.c.l.b16 %v755
  %v872 = vunpack.c.h.b16 %v755
  %v873 = vunpack.c.l.b16 %v756
  %v874 = vunpack.c.h.b16 %v756
  %v875 = vpack.c.b16 %v815, %v811
  %v876 = vpack.c.b16 %v816, %v812
  %v877 = vpack.c.b16 %v817, %v813
  %v878 = vpack.c.b16 %v818, %v814
  %v879 = vpack.c.b16 %v823, %v819
  %v880 = vpack.c.b16 %v824, %v820
  %v881 = vpack.c.b16 %v825, %v821
  %v882 = vpack.c.b16 %v826, %v822
  %v883 = vpack.c.b16 %v831, %v827
  %v884 = vpack.c.b16 %v832, %v828
  %v885 = vpack.c.b16 %v833, %v829
  %v886 = vpack.c.b16 %v834, %v830
  %v887 = vpack.c.b16 %v839, %v835
  %v888 = vpack.c.b16 %v840, %v836
  %v889 = vpack.c.b16 %v841, %v837
  %v890 = vpack.c.b16 %v842, %v838
  %v891 = vpack.c.b16 %v847, %v843
  %v892 = vpack.c.b16 %v848, %v844
  %v893 = vpack.c.b16 %v849, %v845
  %v894 = vpack.c.b16 %v850, %v846
  %v895 = vpack.c.b16 %v855, %v851
  %v896 = vpack.c.b16 %v856, %v852
  %v897 = vpack.c.b16 %v857, %v853
  %v898 = vpack.c.b16 %v858, %v854
  %v899 = vpack.c.b16 %v863, %v859
  %v900 = vpack.c.b16 %v864, %v860
  %v901 = vpack.c.b16 %v865, %v861
  %v902 = vpack.c.b16 %v866, %v862
  %v903 = vpack.c.b16 %v871, %v867
  %v904 = vpack.c.b16 %v872, %v868
  %v905 = vpack.c.b16 %v873, %v869
  %v906 = vpack.c.b16 %v874, %v870
  %939 = vmatprep.subr.bf16.mxu0 %v904
  %940 = vmatpush1.bf16.msra.mxu0 %v903
  %941 = vmatprep.subr.bf16.mxu0 %v900
  %942 = vmatpush1.bf16.msra.mxu0 %v899
  %943 = vmatprep.subr.bf16.mxu0 %v896
  %944 = vmatpush1.bf16.msra.mxu0 %v895
  %945 = vmatprep.subr.bf16.mxu0 %v892
  %946 = vmatpush1.bf16.msra.mxu0 %v891
  %947 = vmatprep.subr.bf16.mxu0 %v888
  %948 = vmatpush1.bf16.msra.mxu0 %v887
  %949 = vmatprep.subr.bf16.mxu0 %v884
  %950 = vmatpush1.bf16.msra.mxu0 %v883
  %951 = vmatprep.subr.bf16.mxu0 %v880
  %952 = vmatpush1.bf16.msra.mxu0 %v879
  %953 = vmatprep.subr.bf16.mxu0 %v876
  %954 = vmatpush1.bf16.msra.mxu0 %v875
  %955 = vmatprep.subr.bf16.mxu0 0
  %956 = vmatpush2.bf16.msra.mxu0 0
  %957 = vmatprep.subr.bf16.mxu0 0
  %958 = vmatpush2.bf16.msra.mxu0 0
  %959 = vmatprep.subr.bf16.mxu0 0
  %960 = vmatpush2.bf16.msra.mxu0 0
  %961 = vmatprep.subr.bf16.mxu0 0
  %962 = vmatpush2.bf16.msra.mxu0 0
  %963 = vmatprep.subr.bf16.mxu0 0
  %964 = vmatpush2.bf16.msra.mxu0 0
  %965 = vmatprep.subr.bf16.mxu0 0
  %966 = vmatpush2.bf16.msra.mxu0 0
  %967 = vmatprep.subr.bf16.mxu0 0
  %968 = vmatpush2.bf16.msra.mxu0 0
  %969 = vmatprep.subr.bf16.mxu0 0
  %970 = vmatpush2.bf16.msra.mxu0 0
  %971 = vmatprep.mubr.bf16.mxu0 0
  %972 = vmatmul.mubr.bf16.gmra.mxu0 %v724
  %v973 = vpop.f32.mrf.mxu0
  %v974 = vadd.f32 %v762, %v973
  %v975 = vpop.f32.mrf.mxu0
  %v976 = vadd.f32 %v766, %v975
  %v977 = vpop.f32.mrf.mxu0
  %v978 = vadd.f32 %v762, %v977
  %v979 = vpop.f32.mrf.mxu0
  %v980 = vadd.f32 %v766, %v979
  %981 = vdwg.mxu0
  %982 = vmatprep.subr.bf16.mxu0 %v906
  %983 = vmatpush1.bf16.msra.mxu0 %v905
  %984 = vmatprep.subr.bf16.mxu0 %v902
  %985 = vmatpush1.bf16.msra.mxu0 %v901
  %986 = vmatprep.subr.bf16.mxu0 %v898
  %987 = vmatpush1.bf16.msra.mxu0 %v897
  %988 = vmatprep.subr.bf16.mxu0 %v894
  %989 = vmatpush1.bf16.msra.mxu0 %v893
  %990 = vmatprep.subr.bf16.mxu0 %v890
  %991 = vmatpush1.bf16.msra.mxu0 %v889
  %992 = vmatprep.subr.bf16.mxu0 %v886
  %993 = vmatpush1.bf16.msra.mxu0 %v885
  %994 = vmatprep.subr.bf16.mxu0 %v882
  %995 = vmatpush1.bf16.msra.mxu0 %v881
  %996 = vmatprep.subr.bf16.mxu0 %v878
  %997 = vmatpush1.bf16.msra.mxu0 %v877
  %998 = vmatprep.subr.bf16.mxu0 0
  %999 = vmatpush2.bf16.msra.mxu0 0
  %1000 = vmatprep.subr.bf16.mxu0 0
  %1001 = vmatpush2.bf16.msra.mxu0 0
  %1002 = vmatprep.subr.bf16.mxu0 0
  %1003 = vmatpush2.bf16.msra.mxu0 0
  %1004 = vmatprep.subr.bf16.mxu0 0
  %1005 = vmatpush2.bf16.msra.mxu0 0
  %1006 = vmatprep.subr.bf16.mxu0 0
  %1007 = vmatpush2.bf16.msra.mxu0 0
  %1008 = vmatprep.subr.bf16.mxu0 0
  %1009 = vmatpush2.bf16.msra.mxu0 0
  %1010 = vmatprep.subr.bf16.mxu0 0
  %1011 = vmatpush2.bf16.msra.mxu0 0
  %1012 = vmatprep.subr.bf16.mxu0 0
  %1013 = vmatpush2.bf16.msra.mxu0 0
  %1014 = vmatprep.mubr.bf16.mxu0 0
  %1015 = vmatmul.mubr.bf16.gmra.mxu0 %v724
  %v1016 = vpop.f32.mrf.mxu0
  %v1017 = vadd.f32 %v770, %v1016
  %v1018 = vpop.f32.mrf.mxu0
  %v1019 = vadd.f32 %v774, %v1018
  %v1020 = vpop.f32.mrf.mxu0
  %v1021 = vadd.f32 %v770, %v1020
  %v1022 = vpop.f32.mrf.mxu0
  %v1023 = vadd.f32 %v774, %v1022
  %1024 = vdwg.mxu0
  %v1025 = vmax.f32 %v974, 0.0
  %v1026 = vmax.f32 %v976, 0.0
  %v1027 = vmax.f32 %v1017, 0.0
  %v1028 = vmax.f32 %v1019, 0.0
  %v1029 = vmax.f32 %v978, 0.0
  %v1030 = vmax.f32 %v980, 0.0
  %v1031 = vmax.f32 %v1021, 0.0
  %v1032 = vmax.f32 %v1023, 0.0
  %v1033 = vpack.c.bf16 %v1029, %v1025
  %v1034 = vpack.c.bf16 %v1030, %v1026
  %v1035 = vpack.c.bf16 %v1031, %v1027
  %v1036 = vpack.c.bf16 %v1032, %v1028
  %v1037 = vld [vmem:[%s9] sm:$0xf]
  %v1038 = vld [vmem:[%s9 + $0x4] sm:$0xf]
  %v1039 = vld [vmem:[%s9 + $0x8] sm:$0xf]
  %v1040 = vld [vmem:[%s9 + $0xc] sm:$0xf]
  %v1041 = vld [vmem:[%s9 + $0x10] sm:$0xf]
  %v1042 = vld [vmem:[%s9 + $0x14] sm:$0xf]
  %v1043 = vld [vmem:[%s9 + $0x18] sm:$0xf]
  %v1044 = vld [vmem:[%s9 + $0x1c] sm:$0xf]
  %v1045 = vld [vmem:[%s9 + $0x20] sm:$0xf]
  %v1046 = vld [vmem:[%s9 + $0x24] sm:$0xf]
  %v1047 = vld [vmem:[%s9 + $0x28] sm:$0xf]
  %v1048 = vld [vmem:[%s9 + $0x2c] sm:$0xf]
  %v1049 = vld [vmem:[%s9 + $0x30] sm:$0xf]
  %v1050 = vld [vmem:[%s9 + $0x34] sm:$0xf]
  %v1051 = vld [vmem:[%s9 + $0x38] sm:$0xf]
  %v1052 = vld [vmem:[%s9 + $0x3c] sm:$0xf]
  %v1053 = vld [vmem:[%s9 + $0x40] sm:$0xf]
  %v1054 = vld [vmem:[%s9 + $0x44] sm:$0xf]
  %v1055 = vld [vmem:[%s9 + $0x48] sm:$0xf]
  %v1056 = vld [vmem:[%s9 + $0x4c] sm:$0xf]
  %v1057 = vld [vmem:[%s9 + $0x50] sm:$0xf]
  %v1058 = vld [vmem:[%s9 + $0x54] sm:$0xf]
  %v1059 = vld [vmem:[%s9 + $0x58] sm:$0xf]
  %v1060 = vld [vmem:[%s9 + $0x5c] sm:$0xf]
  %v1061 = vld [vmem:[%s9 + $0x60] sm:$0xf]
  %v1062 = vld [vmem:[%s9 + $0x64] sm:$0xf]
  %v1063 = vld [vmem:[%s9 + $0x68] sm:$0xf]
  %v1064 = vld [vmem:[%s9 + $0x6c] sm:$0xf]
  %v1065 = vld [vmem:[%s9 + $0x70] sm:$0xf]
  %v1066 = vld [vmem:[%s9 + $0x74] sm:$0xf]
  %v1067 = vld [vmem:[%s9 + $0x78] sm:$0xf]
  %v1068 = vld [vmem:[%s9 + $0x7c] sm:$0xf]
  %v1069 = vld [vmem:[%s9 + $0x80] sm:$0xf]
  %v1070 = vld [vmem:[%s9 + $0x84] sm:$0xf]
  %v1071 = vld [vmem:[%s9 + $0x88] sm:$0xf]
  %v1072 = vld [vmem:[%s9 + $0x8c] sm:$0xf]
  %v1073 = vld [vmem:[%s9 + $0x90] sm:$0xf]
  %v1074 = vld [vmem:[%s9 + $0x94] sm:$0xf]
  %v1075 = vld [vmem:[%s9 + $0x98] sm:$0xf]
  %v1076 = vld [vmem:[%s9 + $0x9c] sm:$0xf]
  %v1077 = vld [vmem:[%s9 + $0xa0] sm:$0xf]
  %v1078 = vld [vmem:[%s9 + $0xa4] sm:$0xf]
  %v1079 = vld [vmem:[%s9 + $0xa8] sm:$0xf]
  %v1080 = vld [vmem:[%s9 + $0xac] sm:$0xf]
  %v1081 = vld [vmem:[%s9 + $0xb0] sm:$0xf]
  %v1082 = vld [vmem:[%s9 + $0xb4] sm:$0xf]
  %v1083 = vld [vmem:[%s9 + $0xb8] sm:$0xf]
  %v1084 = vld [vmem:[%s9 + $0xbc] sm:$0xf]
  %v1085 = vld [vmem:[%s9 + $0xc0] sm:$0xf]
  %v1086 = vld [vmem:[%s9 + $0xc4] sm:$0xf]
  %v1087 = vld [vmem:[%s9 + $0xc8] sm:$0xf]
  %v1088 = vld [vmem:[%s9 + $0xcc] sm:$0xf]
  %v1089 = vld [vmem:[%s9 + $0xd0] sm:$0xf]
  %v1090 = vld [vmem:[%s9 + $0xd4] sm:$0xf]
  %v1091 = vld [vmem:[%s9 + $0xd8] sm:$0xf]
  %v1092 = vld [vmem:[%s9 + $0xdc] sm:$0xf]
  %v1093 = vld [vmem:[%s9 + $0xe0] sm:$0xf]
  %v1094 = vld [vmem:[%s9 + $0xe4] sm:$0xf]
  %v1095 = vld [vmem:[%s9 + $0xe8] sm:$0xf]
  %v1096 = vld [vmem:[%s9 + $0xec] sm:$0xf]
  %v1097 = vld [vmem:[%s9 + $0xf0] sm:$0xf]
  %v1098 = vld [vmem:[%s9 + $0xf4] sm:$0xf]
  %v1099 = vld [vmem:[%s9 + $0xf8] sm:$0xf]
  %v1100 = vld [vmem:[%s9 + $0xfc] sm:$0xf]
  %v1101 = vld [vmem:[%s10] sm:$0x1]
  %v1103 = vlaneseq
  %v1104 = vshrl.u32 %v1103, 7
  %v1105 = vsub.s32 0, %v1104
  %v1106 = vrot.slane %v1101, %v1105
  %v1172 = vunpack.c.l.b16 %v1037
  %v1173 = vunpack.c.l.b16 %v1038
  %v1174 = vunpack.c.l.b16 %v1039
  %v1175 = vunpack.c.l.b16 %v1040
  %v1176 = vunpack.c.l.b16 %v1041
  %v1177 = vunpack.c.l.b16 %v1042
  %v1178 = vunpack.c.l.b16 %v1043
  %v1179 = vunpack.c.l.b16 %v1044
  %v1180 = vunpack.c.l.b16 %v1045
  %v1181 = vunpack.c.l.b16 %v1046
  %v1182 = vunpack.c.l.b16 %v1047
  %v1183 = vunpack.c.l.b16 %v1048
  %v1184 = vunpack.c.l.b16 %v1049
  %v1185 = vunpack.c.l.b16 %v1050
  %v1186 = vunpack.c.l.b16 %v1051
  %v1187 = vunpack.c.l.b16 %v1052
  %v1188 = vunpack.c.l.b16 %v1053
  %v1189 = vunpack.c.l.b16 %v1054
  %v1190 = vunpack.c.l.b16 %v1055
  %v1191 = vunpack.c.l.b16 %v1056
  %v1192 = vunpack.c.l.b16 %v1057
  %v1193 = vunpack.c.l.b16 %v1058
  %v1194 = vunpack.c.l.b16 %v1059
  %v1195 = vunpack.c.l.b16 %v1060
  %v1196 = vunpack.c.l.b16 %v1061
  %v1197 = vunpack.c.l.b16 %v1062
  %v1198 = vunpack.c.l.b16 %v1063
  %v1199 = vunpack.c.l.b16 %v1064
  %v1200 = vunpack.c.l.b16 %v1065
  %v1201 = vunpack.c.l.b16 %v1066
  %v1202 = vunpack.c.l.b16 %v1067
  %v1203 = vunpack.c.l.b16 %v1068
  %v1204 = vunpack.c.l.b16 %v1069
  %v1205 = vunpack.c.l.b16 %v1070
  %v1206 = vunpack.c.l.b16 %v1071
  %v1207 = vunpack.c.l.b16 %v1072
  %v1208 = vunpack.c.l.b16 %v1073
  %v1209 = vunpack.c.l.b16 %v1074
  %v1210 = vunpack.c.l.b16 %v1075
  %v1211 = vunpack.c.l.b16 %v1076
  %v1212 = vunpack.c.l.b16 %v1077
  %v1213 = vunpack.c.l.b16 %v1078
  %v1214 = vunpack.c.l.b16 %v1079
  %v1215 = vunpack.c.l.b16 %v1080
  %v1216 = vunpack.c.l.b16 %v1081
  %v1217 = vunpack.c.l.b16 %v1082
  %v1218 = vunpack.c.l.b16 %v1083
  %v1219 = vunpack.c.l.b16 %v1084
  %v1220 = vunpack.c.l.b16 %v1085
  %v1221 = vunpack.c.l.b16 %v1086
  %v1222 = vunpack.c.l.b16 %v1087
  %v1223 = vunpack.c.l.b16 %v1088
  %v1224 = vunpack.c.l.b16 %v1089
  %v1225 = vunpack.c.l.b16 %v1090
  %v1226 = vunpack.c.l.b16 %v1091
  %v1227 = vunpack.c.l.b16 %v1092
  %v1228 = vunpack.c.l.b16 %v1093
  %v1229 = vunpack.c.l.b16 %v1094
  %v1230 = vunpack.c.l.b16 %v1095
  %v1231 = vunpack.c.l.b16 %v1096
  %v1232 = vunpack.c.l.b16 %v1097
  %v1233 = vunpack.c.l.b16 %v1098
  %v1234 = vunpack.c.l.b16 %v1099
  %v1235 = vunpack.c.l.b16 %v1100
  %v1236 = vpack.c.b16 %v1173, %v1172
  %v1237 = vpack.c.b16 %v1175, %v1174
  %v1238 = vpack.c.b16 %v1177, %v1176
  %v1239 = vpack.c.b16 %v1179, %v1178
  %v1240 = vpack.c.b16 %v1181, %v1180
  %v1241 = vpack.c.b16 %v1183, %v1182
  %v1242 = vpack.c.b16 %v1185, %v1184
  %v1243 = vpack.c.b16 %v1187, %v1186
  %v1244 = vpack.c.b16 %v1189, %v1188
  %v1245 = vpack.c.b16 %v1191, %v1190
  %v1246 = vpack.c.b16 %v1193, %v1192
  %v1247 = vpack.c.b16 %v1195, %v1194
  %v1248 = vpack.c.b16 %v1197, %v1196
  %v1249 = vpack.c.b16 %v1199, %v1198
  %v1250 = vpack.c.b16 %v1201, %v1200
  %v1251 = vpack.c.b16 %v1203, %v1202
  %v1252 = vpack.c.b16 %v1205, %v1204
  %v1253 = vpack.c.b16 %v1207, %v1206
  %v1254 = vpack.c.b16 %v1209, %v1208
  %v1255 = vpack.c.b16 %v1211, %v1210
  %v1256 = vpack.c.b16 %v1213, %v1212
  %v1257 = vpack.c.b16 %v1215, %v1214
  %v1258 = vpack.c.b16 %v1217, %v1216
  %v1259 = vpack.c.b16 %v1219, %v1218
  %v1260 = vpack.c.b16 %v1221, %v1220
  %v1261 = vpack.c.b16 %v1223, %v1222
  %v1262 = vpack.c.b16 %v1225, %v1224
  %v1263 = vpack.c.b16 %v1227, %v1226
  %v1264 = vpack.c.b16 %v1229, %v1228
  %v1265 = vpack.c.b16 %v1231, %v1230
  %v1266 = vpack.c.b16 %v1233, %v1232
  %v1267 = vpack.c.b16 %v1235, %v1234
  %1300 = vmatprep.subr.bf16.mxu0 0
  %1301 = vmatpush1.bf16.msra.mxu0 %v1243
  %1302 = vmatprep.subr.bf16.mxu0 0
  %1303 = vmatpush1.bf16.msra.mxu0 %v1242
  %1304 = vmatprep.subr.bf16.mxu0 0
  %1305 = vmatpush1.bf16.msra.mxu0 %v1241
  %1306 = vmatprep.subr.bf16.mxu0 0
  %1307 = vmatpush1.bf16.msra.mxu0 %v1240
  %1308 = vmatprep.subr.bf16.mxu0 0
  %1309 = vmatpush1.bf16.msra.mxu0 %v1239
  %1310 = vmatprep.subr.bf16.mxu0 0
  %1311 = vmatpush1.bf16.msra.mxu0 %v1238
  %1312 = vmatprep.subr.bf16.mxu0 0
  %1313 = vmatpush1.bf16.msra.mxu0 %v1237
  %1314 = vmatprep.subr.bf16.mxu0 0
  %1315 = vmatpush1.bf16.msra.mxu0 %v1236
  %1316 = vmatprep.subr.bf16.mxu0 0
  %1317 = vmatpush2.bf16.msra.mxu0 %v1251
  %1318 = vmatprep.subr.bf16.mxu0 0
  %1319 = vmatpush2.bf16.msra.mxu0 %v1250
  %1320 = vmatprep.subr.bf16.mxu0 0
  %1321 = vmatpush2.bf16.msra.mxu0 %v1249
  %1322 = vmatprep.subr.bf16.mxu0 0
  %1323 = vmatpush2.bf16.msra.mxu0 %v1248
  %1324 = vmatprep.subr.bf16.mxu0 0
  %1325 = vmatpush2.bf16.msra.mxu0 %v1247
  %1326 = vmatprep.subr.bf16.mxu0 0
  %1327 = vmatpush2.bf16.msra.mxu0 %v1246
  %1328 = vmatprep.subr.bf16.mxu0 0
  %1329 = vmatpush2.bf16.msra.mxu0 %v1245
  %1330 = vmatprep.subr.bf16.mxu0 0
  %1331 = vmatpush2.bf16.msra.mxu0 %v1244
  %1332 = vmatprep.mubr.bf16.mxu0 %v1034
  %1333 = vmatmul.mubr.bf16.gmra.mxu0 %v1033
  %v1334 = vpop.f32.mrf.mxu0
  %v1335 = vadd.f32 %v1106, %v1334
  %v1336 = vpop.f32.mrf.mxu0
  %v1337 = vpop.f32.mrf.mxu0
  %v1338 = vadd.f32 %v1106, %v1337
  %v1339 = vpop.f32.mrf.mxu0
  %1340 = vdwg.mxu0
  %1341 = vmatprep.subr.bf16.mxu0 0
  %1342 = vmatpush1.bf16.msra.mxu0 %v1259
  %1343 = vmatprep.subr.bf16.mxu0 0
  %1344 = vmatpush1.bf16.msra.mxu0 %v1258
  %1345 = vmatprep.subr.bf16.mxu0 0
  %1346 = vmatpush1.bf16.msra.mxu0 %v1257
  %1347 = vmatprep.subr.bf16.mxu0 0
  %1348 = vmatpush1.bf16.msra.mxu0 %v1256
  %1349 = vmatprep.subr.bf16.mxu0 0
  %1350 = vmatpush1.bf16.msra.mxu0 %v1255
  %1351 = vmatprep.subr.bf16.mxu0 0
  %1352 = vmatpush1.bf16.msra.mxu0 %v1254
  %1353 = vmatprep.subr.bf16.mxu0 0
  %1354 = vmatpush1.bf16.msra.mxu0 %v1253
  %1355 = vmatprep.subr.bf16.mxu0 0
  %1356 = vmatpush1.bf16.msra.mxu0 %v1252
  %1357 = vmatprep.subr.bf16.mxu0 0
  %1358 = vmatpush2.bf16.msra.mxu0 %v1267
  %1359 = vmatprep.subr.bf16.mxu0 0
  %1360 = vmatpush2.bf16.msra.mxu0 %v1266
  %1361 = vmatprep.subr.bf16.mxu0 0
  %1362 = vmatpush2.bf16.msra.mxu0 %v1265
  %1363 = vmatprep.subr.bf16.mxu0 0
  %1364 = vmatpush2.bf16.msra.mxu0 %v1264
  %1365 = vmatprep.subr.bf16.mxu0 0
  %1366 = vmatpush2.bf16.msra.mxu0 %v1263
  %1367 = vmatprep.subr.bf16.mxu0 0
  %1368 = vmatpush2.bf16.msra.mxu0 %v1262
  %1369 = vmatprep.subr.bf16.mxu0 0
  %1370 = vmatpush2.bf16.msra.mxu0 %v1261
  %1371 = vmatprep.subr.bf16.mxu0 0
  %1372 = vmatpush2.bf16.msra.mxu0 %v1260
  %1373 = vmatprep.mubr.bf16.mxu0 %v1036
  %1374 = vmatmul.mubr.bf16.gmra.mxu0 %v1035
  %v1375 = vpop.f32.mrf.mxu0
  %v1376 = vadd.f32 %v1335, %v1375
  %v1377 = vpop.f32.mrf.mxu0
  %v1378 = vpop.f32.mrf.mxu0
  %v1379 = vadd.f32 %v1338, %v1378
  %v1380 = vpop.f32.mrf.mxu0
  %1381 = vdwg.mxu0
  %v1382 = vpack.c.bf16 %v1379, %v1376
  %v1384 = vunpack.c.l.b16 %v1382
  %v1385 = vunpack.c.h.b16 %v1382
  %v1386 = vpack.c.b16 %v1384, %v1384
  %v1387 = vpack.c.b16 %v1385, %v1385
  %1390 = vst [vmem:[%s11] sm:$0xf] %v1386
  %1391 = vst [vmem:[%s11 + $0x4] sm:$0xf] %v1387
  // Predicated region
  $region46: #{autoencoder_forward.1} parent=0 // pred_check
    _
  $region47: #{autoencoder_forward.1} parent=0 // pred_check_branch
    %1393 = sbr.rel (0) target = $region49
  $region48: #{autoencoder_forward.1} parent=0 // pred_region
    _
  $region49: #{autoencoder_forward.1} parent=0 // pred_fallthru
    _
  // Predicated region
  $region50: #{autoencoder_forward.1} parent=0 // pred_check
    _
  $region51: #{autoencoder_forward.1} parent=0 // pred_check_branch
    %1395 = sbr.rel (0) target = $region53
  $region52: #{autoencoder_forward.1} parent=0 // pred_region
    _
  $region53: #{autoencoder_forward.1} parent=0 // pred_fallthru
    _

</llo_original>
